<compile_context>
chip_gen: v5e
topology: v5e:2x2
jax: 0.10.0
libtpu: 0.0.40
codegen_flags: <defaults>
</compile_context>

<pallas_src>
import functools

import jax
import jax.numpy as jnp
from jax.experimental import pallas as pl
from jax.experimental.pallas import tpu as pltpu


def _mlp_kernel(x_ref, w1_ref, b1_ref, w2_ref, b2_ref, w3_ref, b3_ref, out_ref):
    """One batch-tile of the SC_DNN forward pass.

    x_ref:  (TB, F0)   bf16
    w1_ref: (F0, H1)   bf16,  b1_ref: (1, H1) f32
    w2_ref: (H1, H2)   bf16,  b2_ref: (1, H2) f32
    w3_ref: (1, H2)    f32,   b3_ref: (1, 1)  f32
    out_ref: (1, 1, TB) f32   (batch on the lane axis -> unmasked stores)
    """
    x = x_ref[...]                                                    # bf16

    h1 = jnp.dot(x, w1_ref[...], preferred_element_type=jnp.float32)  # MXU, f32 acc
    h1 = jnp.maximum(h1 + b1_ref[...], 0.0)                           # f32 VPU
    h1 = h1.astype(jnp.bfloat16)

    h2 = jnp.dot(h1, w2_ref[...], preferred_element_type=jnp.float32)
    h2 = jnp.maximum(h2 + b2_ref[...], 0.0)                           # (TB, H2) f32

    # Final Linear(H2 -> 1) as (1, H2) @ (H2, TB): multiply + reduce over the
    # feature axis, yielding the lane-dense (1, TB) row directly.
    y = jnp.dot(w3_ref[...], h2.T, preferred_element_type=jnp.float32)
    y = y + b3_ref[...]                                               # (1, TB)

    out_ref[...] = y[None].astype(out_ref.dtype)                      # (1, 1, TB)


@functools.partial(jax.jit, static_argnames=("block_b",))
def sc_dnn_forward(x, params, block_b=512):
    """Pallas implementation of SC_DNN.forward: returns dnn(x).squeeze(-1)."""
    w1, b1, w2, b2, w3, b3 = params
    B, F0 = x.shape
    H1 = w1.shape[1]
    H2 = w2.shape[1]

    num_tiles = pl.cdiv(B, block_b)

    # bf16 operands for the MXU (accumulation stays f32 inside the kernel).
    # In production x would already live in HBM as bf16; the cast here is a
    # cheap one-time prep op.
    x_bf = x.astype(jnp.bfloat16)
    w1_bf = w1.astype(jnp.bfloat16)
    w2_bf = w2.astype(jnp.bfloat16)
    w3_row = w3.astype(jnp.float32).reshape(1, H2)   # (1, H2) row for final layer
    b1_f = b1.astype(jnp.float32)
    b2_f = b2.astype(jnp.float32)
    b3_f = b3.astype(jnp.float32)

    x_spec = pl.BlockSpec((block_b, F0), lambda i: (i, 0))
    w1_spec = pl.BlockSpec((F0, H1), lambda i: (0, 0))
    b1_spec = pl.BlockSpec((1, H1), lambda i: (0, 0))
    w2_spec = pl.BlockSpec((H1, H2), lambda i: (0, 0))
    b2_spec = pl.BlockSpec((1, H2), lambda i: (0, 0))
    w3_spec = pl.BlockSpec((1, H2), lambda i: (0, 0))
    b3_spec = pl.BlockSpec((1, 1), lambda i: (0, 0))
    out_spec = pl.BlockSpec((1, 1, block_b), lambda i: (i, 0, 0))

    flops = 2 * B * (F0 * H1 + H1 * H2 + H2)
    bytes_accessed = (B * F0 * 2                       # x (bf16)
                      + (F0 * H1 + H1 * H2) * 2        # w1, w2 (bf16)
                      + (H1 + H2 + H2 + 1) * 4         # biases + w3 (f32)
                      + num_tiles * block_b * 4)       # output (f32)

    out = pl.pallas_call(
        _mlp_kernel,
        out_shape=jax.ShapeDtypeStruct((num_tiles, 1, block_b), jnp.float32),
        grid_spec=pltpu.PrefetchScalarGridSpec(
            num_scalar_prefetch=0,
            grid=(num_tiles,),
            in_specs=[x_spec, w1_spec, b1_spec, w2_spec, b2_spec, w3_spec, b3_spec],
            out_specs=out_spec,
        ),
        compiler_params=pltpu.CompilerParams(
            dimension_semantics=("parallel",),
        ),
        cost_estimate=pl.CostEstimate(
            flops=flops, transcendentals=0, bytes_accessed=bytes_accessed),
    )(x_bf, w1_bf, b1_f, w2_bf, b2_f, w3_row, b3_f)

    # (num_tiles, 1, block_b) -> (B,)   (matches PyTorch `.squeeze(-1)`)
    return out.reshape(-1)[:B]


def init_params(key, input_size, hidden_sizes):
    """Deterministic init mimicking nn.Linear defaults (U(-1/sqrt(fan_in), ...))."""
    sizes = [input_size] + list(hidden_sizes) + [1]
    params = []
    for fan_in, fan_out in zip(sizes[:-1], sizes[1:]):
        key, kw, kb = jax.random.split(key, 3)
        bound = 1.0 / jnp.sqrt(float(fan_in))
        w = jax.random.uniform(kw, (fan_in, fan_out), jnp.float32, -bound, bound)
        b = jax.random.uniform(kb, (1, fan_out), jnp.float32, -bound, bound)
        params.extend([w, b])
    return tuple(params)


def reference_forward(x, params):
    """Pure-JAX reference using the same bf16-input / f32-accumulation recipe."""
    w1, b1, w2, b2, w3, b3 = params
    xb = x.astype(jnp.bfloat16)
    h1 = jnp.maximum(
        jnp.dot(xb, w1.astype(jnp.bfloat16),
                preferred_element_type=jnp.float32) + b1, 0.0)
    h2 = jnp.maximum(
        jnp.dot(h1.astype(jnp.bfloat16), w2.astype(jnp.bfloat16),
                preferred_element_type=jnp.float32) + b2, 0.0)
    y = jnp.dot(h2, w3.astype(jnp.float32),
                preferred_element_type=jnp.float32) + b3
    return y[:, 0]


if __name__ == "__main__":
    key = jax.random.PRNGKey(0)

    input_size = 32
    hidden_sizes = (64, 32)  # args.SC_dnn_hidden_sizes

    kx, kp = jax.random.split(key)
    params = init_params(kp, input_size, hidden_sizes)

    # Aligned case: 2 grid tiles (keeps both v7x TensorCores busy).
    batch = 256
    x = jax.random.normal(kx, (batch, input_size), jnp.float32)
    out = jax.block_until_ready(sc_dnn_forward(x, params, block_b=128))
    ref = reference_forward(x, params)
    assert out.shape == (batch,), out.shape
    assert jnp.allclose(out, ref, atol=1e-3, rtol=1e-3), float(jnp.max(jnp.abs(out - ref)))

    # Ragged case: last batch tile is OOB-padded by Pallas; padded lanes dropped.
    batch2 = 200
    x2 = x[:batch2]
    out2 = jax.block_until_ready(sc_dnn_forward(x2, params, block_b=128))
    ref2 = reference_forward(x2, params)
    assert out2.shape == (batch2,), out2.shape
    assert jnp.allclose(out2, ref2, atol=1e-3, rtol=1e-3), float(jnp.max(jnp.abs(out2 - ref2)))

    print("KERNEL_OK")
</pallas_src>

<mosaic_0001>
module attributes {stable_mosaic.version = 11 : i64} {
  func.func @_mlp_kernel(%arg0: i32, %arg1: memref<128x32xbf16, #tpu.memory_space<vmem>>, %arg2: memref<32x64xbf16, #tpu.memory_space<vmem>>, %arg3: memref<1x64xf32, #tpu.memory_space<vmem>>, %arg4: memref<64x32xbf16, #tpu.memory_space<vmem>>, %arg5: memref<1x32xf32, #tpu.memory_space<vmem>>, %arg6: memref<1x32xf32, #tpu.memory_space<vmem>>, %arg7: memref<1x1xf32, #tpu.memory_space<vmem>>, %arg8: memref<1x1x128xf32, #tpu.memory_space<vmem>>) attributes {dimension_semantics = [#tpu.dimension_semantics<parallel>], iteration_bounds = array<i64: 2>, scalar_prefetch = 0 : i64, scratch_operands = 0 : i64, tpu.core_type = #tpu.core_type<tc>, window_params = [{transform_indices = @transform_0, window_bounds = array<i64: 128, 32>}, {pipeline_mode = #tpu.pipeline_mode<synchronous>, transform_indices = @transform_1, window_bounds = array<i64: 32, 64>}, {pipeline_mode = #tpu.pipeline_mode<synchronous>, transform_indices = @transform_2, window_bounds = array<i64: 1, 64>}, {pipeline_mode = #tpu.pipeline_mode<synchronous>, transform_indices = @transform_3, window_bounds = array<i64: 64, 32>}, {pipeline_mode = #tpu.pipeline_mode<synchronous>, transform_indices = @transform_4, window_bounds = array<i64: 1, 32>}, {pipeline_mode = #tpu.pipeline_mode<synchronous>, transform_indices = @transform_5, window_bounds = array<i64: 1, 32>}, {pipeline_mode = #tpu.pipeline_mode<synchronous>, transform_indices = @transform_6, window_bounds = array<i64: 1, 1>}, {transform_indices = @transform_7, window_bounds = array<i64: 1, 1, 128>}]} {
    %c0 = arith.constant 0 : index
    %c0_0 = arith.constant 0 : index
    %0 = vector.load %arg1[%c0, %c0_0] : memref<128x32xbf16, #tpu.memory_space<vmem>>, vector<128x32xbf16>
    %c0_1 = arith.constant 0 : index
    %c0_2 = arith.constant 0 : index
    %1 = vector.load %arg2[%c0_1, %c0_2] : memref<32x64xbf16, #tpu.memory_space<vmem>>, vector<32x64xbf16>
    %cst = arith.constant dense<0.000000e+00> : vector<128x64xf32>
    %2 = tpu.matmul %0, %1, %cst {dimension_numbers = #tpu.dot_dimension_numbers<[1], [0], [0], [1], [0, 0, 1, 1], [], []>} : vector<128x32xbf16>, vector<32x64xbf16>, vector<128x64xf32> -> vector<128x64xf32>
    %c0_3 = arith.constant 0 : index
    %c0_4 = arith.constant 0 : index
    %3 = vector.load %arg3[%c0_3, %c0_4] : memref<1x64xf32, #tpu.memory_space<vmem>>, vector<1x64xf32>
    %4 = vector.broadcast %3 : vector<1x64xf32> to vector<128x64xf32>
    %5 = arith.addf %2, %4 : vector<128x64xf32>
    %cst_5 = arith.constant 0.000000e+00 : f32
    %6 = vector.broadcast %cst_5 : f32 to vector<128x64xf32>
    %7 = arith.maximumf %5, %6 : vector<128x64xf32>
    %8 = arith.truncf %7 : vector<128x64xf32> to vector<128x64xbf16>
    %c0_6 = arith.constant 0 : index
    %c0_7 = arith.constant 0 : index
    %9 = vector.load %arg4[%c0_6, %c0_7] : memref<64x32xbf16, #tpu.memory_space<vmem>>, vector<64x32xbf16>
    %cst_8 = arith.constant dense<0.000000e+00> : vector<128x32xf32>
    %10 = tpu.matmul %8, %9, %cst_8 {dimension_numbers = #tpu.dot_dimension_numbers<[1], [0], [0], [1], [0, 0, 1, 1], [], []>} : vector<128x64xbf16>, vector<64x32xbf16>, vector<128x32xf32> -> vector<128x32xf32>
    %c0_9 = arith.constant 0 : index
    %c0_10 = arith.constant 0 : index
    %11 = vector.load %arg5[%c0_9, %c0_10] : memref<1x32xf32, #tpu.memory_space<vmem>>, vector<1x32xf32>
    %12 = vector.broadcast %11 : vector<1x32xf32> to vector<128x32xf32>
    %13 = arith.addf %10, %12 : vector<128x32xf32>
    %cst_11 = arith.constant 0.000000e+00 : f32
    %14 = vector.broadcast %cst_11 : f32 to vector<128x32xf32>
    %15 = arith.maximumf %13, %14 : vector<128x32xf32>
    %c0_12 = arith.constant 0 : index
    %c0_13 = arith.constant 0 : index
    %16 = vector.load %arg6[%c0_12, %c0_13] : memref<1x32xf32, #tpu.memory_space<vmem>>, vector<1x32xf32>
    %17 = tpu.transpose %15, [1, 0] : vector<128x32xf32> -> vector<32x128xf32>
    %cst_14 = arith.constant dense<0.000000e+00> : vector<1x128xf32>
    %18 = tpu.matmul %16, %17, %cst_14 {dimension_numbers = #tpu.dot_dimension_numbers<[1], [0], [0], [1], [0, 0, 1, 1], [], []>} : vector<1x32xf32>, vector<32x128xf32>, vector<1x128xf32> -> vector<1x128xf32>
    %c0_15 = arith.constant 0 : index
    %c0_16 = arith.constant 0 : index
    %19 = vector.load %arg7[%c0_15, %c0_16] : memref<1x1xf32, #tpu.memory_space<vmem>>, vector<1x1xf32>
    %20 = vector.broadcast %19 : vector<1x1xf32> to vector<1x128xf32>
    %21 = arith.addf %18, %20 : vector<1x128xf32>
    %22 = vector.shape_cast %21 : vector<1x128xf32> to vector<1x1x128xf32>
    %c0_17 = arith.constant 0 : index
    %c0_18 = arith.constant 0 : index
    %c0_19 = arith.constant 0 : index
    %23 = vector.load %arg8[%c0_17, %c0_18, %c0_19] : memref<1x1x128xf32, #tpu.memory_space<vmem>>, vector<1x1x128xf32>
    tpu.vector_store %arg8[%c0_17, %c0_18, %c0_19], %22 {strides = array<i32>} : memref<1x1x128xf32, #tpu.memory_space<vmem>>, vector<1x1x128xf32>,
    return
  }
  func.func @transform_0(%arg0: i32) -> (i32, i32) {
    %c0_i32 = arith.constant 0 : i32
    %c0_i32_0 = arith.constant 0 : i32
    return %arg0, %c0_i32 : i32, i32
  }
  func.func @transform_1(%arg0: i32) -> (i32, i32) {
    %c0_i32 = arith.constant 0 : i32
    %c0_i32_0 = arith.constant 0 : i32
    %c0_i32_1 = arith.constant 0 : i32
    return %c0_i32, %c0_i32_0 : i32, i32
  }
  func.func @transform_2(%arg0: i32) -> (i32, i32) {
    %c0_i32 = arith.constant 0 : i32
    %c0_i32_0 = arith.constant 0 : i32
    %c0_i32_1 = arith.constant 0 : i32
    return %c0_i32, %c0_i32_0 : i32, i32
  }
  func.func @transform_3(%arg0: i32) -> (i32, i32) {
    %c0_i32 = arith.constant 0 : i32
    %c0_i32_0 = arith.constant 0 : i32
    %c0_i32_1 = arith.constant 0 : i32
    return %c0_i32, %c0_i32_0 : i32, i32
  }
  func.func @transform_4(%arg0: i32) -> (i32, i32) {
    %c0_i32 = arith.constant 0 : i32
    %c0_i32_0 = arith.constant 0 : i32
    %c0_i32_1 = arith.constant 0 : i32
    return %c0_i32, %c0_i32_0 : i32, i32
  }
  func.func @transform_5(%arg0: i32) -> (i32, i32) {
    %c0_i32 = arith.constant 0 : i32
    %c0_i32_0 = arith.constant 0 : i32
    %c0_i32_1 = arith.constant 0 : i32
    return %c0_i32, %c0_i32_0 : i32, i32
  }
  func.func @transform_6(%arg0: i32) -> (i32, i32) {
    %c0_i32 = arith.constant 0 : i32
    %c0_i32_0 = arith.constant 0 : i32
    %c0_i32_1 = arith.constant 0 : i32
    return %c0_i32, %c0_i32_0 : i32, i32
  }
  func.func @transform_7(%arg0: i32) -> (i32, i32, i32) {
    %c0_i32 = arith.constant 0 : i32
    %c0_i32_0 = arith.constant 0 : i32
    %c0_i32_1 = arith.constant 0 : i32
    return %arg0, %c0_i32, %c0_i32_0 : i32, i32, i32
  }
}

</mosaic_0001>

<llo_original>
// kernel: sc_dnn_forward.1
$region0: #{sc_dnn_forward.1}
  #allocation0 [shape = 'u32[]', space=smem, size = 0x4, offset = 0x4, fixed_abs, tag = 'smem constant byte address 0x4 - core index']
  #allocation1 [shape = 'u32[72,128]{1,0:T(1,128)}', space=vmem, size = 0x9000, scoped, tag = 'internal scratch']
  #allocation2 [shape = 'f32[1,1]{1,0:T(1,128)S(1)}', space=vmem, size = 0x200, scoped, tag = 'scoped memory for sc_dnn_forward.1']
  %s0 = inlined_call_operand.vmem [shape: bf16[256,32], index: 0, kind: input, shape index: {}]
  %s1 = inlined_call_operand.vmem [shape: bf16[32,64], index: 1, kind: input, shape index: {}]
  %s2 = inlined_call_operand.vmem [shape: f32[1,64], index: 2, kind: input, shape index: {}]
  %s3 = inlined_call_operand.vmem [shape: bf16[64,32], index: 3, kind: input, shape index: {}]
  %s4 = inlined_call_operand.vmem [shape: f32[1,32], index: 4, kind: input, shape index: {}]
  %s5 = inlined_call_operand.vmem [shape: f32[1,32], index: 5, kind: input, shape index: {}]
  %s6 = inlined_call_operand.<no memory space> [shape: f32[1,1], index: 6, kind: input, shape index: {}]
  %s7 = inlined_call_operand.hbm [shape: f32[2,1,128], index: 7, kind: output, shape index: {}]
  %s8 = sld [smem:[#allocation0]]
  $region61: #{sc_dnn_forward.1} parent=0
    _
  %s10 = ssub.s32 1, %s8
  %s11 = scalar_select 0, %s10, %s8
  %v12 = vstv %s6
  %13 = vst [vmem:[#allocation2] sm:$0x1] %v12
  $region1: #{sc_dnn_forward.1} parent=0
    #allocation3 [shape = 'u8[1024]{0}', space=vmem, size = 0x400, scoped, tag = 'output window, operand 0']
    #allocation4 [shape = 's32[2]{0}', space=sflag, size = 0x8, scoped, tag = 'scoped memory for sc_dnn_forward.1']
    %14 = vsyncpa [#allocation4], 0
    %s15 = scalar_lea.sflag [#allocation4], 1
    %16 = vsyncpa %s15, 0
    loop: start=0, step=1, limit=4
    $region2: #{sc_dnn_forward.1} parent=1 // loop_pre_header
      _
    $region3: #{sc_dnn_forward.1} parent=1 // loop_header
      %s18 = sphi 0, %s22
      %p19 = scmp.ge.s32.totalorder %s18, 4
      %s28 = sphi 0, %s30
      %s31 = sphi 0, %s28
      %s32 = sphi 0, %s31
      %s48 = sphi 0, %s32
      %s52 = sphi 0, %s52
      %s54 = sphi 0, %s52
      %s55 = sphi 0, %s54
      %s69 = sphi 0, %s55
      %s73 = sphi 0, %s73
      %s75 = sphi 0, %s73
      %s76 = sphi 0, %s75
      %s90 = sphi 0, %s76
      %s94 = sphi 0, %s94
      %s96 = sphi 0, %s94
      %s97 = sphi 0, %s96
      %s111 = sphi 0, %s97
      %s115 = sphi 0, %s115
      %s117 = sphi 0, %s115
      %s118 = sphi 0, %s117
      %s132 = sphi 0, %s118
      %s136 = sphi 0, %s136
      %s138 = sphi 0, %s136
      %s139 = sphi 0, %s138
      %s153 = sphi 0, %s139
      %s157 = sphi 0, %s157
      %s159 = sphi 0, %s157
      %s160 = sphi 0, %s159
      %s174 = sphi 0, %s160
      %s180 = sphi 0, %s182
      %s183 = sphi 0, %s180
      %s184 = sphi 0, %s183
      %s200 = sphi 0, %s184
    $region4: #{sc_dnn_forward.1} parent=1 // loop_header_branch
      %21 = sbr.rel (%p19) target = $region8
    $region5: #{sc_dnn_forward.1} parent=1 // loop_body
      %s23 = ssub.s32 %s18, 1
      %s24 = ssub.s32 %s18, 2
      %s25 = sadd.s32 %s18, 1
      %s26 = ssub.s32 %s18, %s25
      %p27 = scmp.eq.s32.totalorder %s26, 0
      %s29 = sadd.s32 %s28, 1
      %s30 = scalar_select %p27, %s28, %s29
      %p33 = pneg %p27
      %p34 = scmp.eq.s32.totalorder %s18, 1
      %p35 = por %p33, %p34
      %p36 = scmp.ne.s32.totalorder %s28, %s31
      %p37 = scmp.eq.s32.totalorder %s18, 0
      %p38 = por %p36, %p37
      %p39 = scmp.ne.s32.totalorder %s28, %s31
      %p40 = scmp.eq.s32.totalorder %s23, 1
      %p41 = por %p39, %p40
      %p42 = scmp.ne.s32.totalorder %s31, %s32
      %p43 = scmp.eq.s32.totalorder %s23, 0
      %p44 = por %p42, %p43
      %p45 = scmp.ne.s32.totalorder %s31, %s32
      %p46 = scmp.eq.s32.totalorder %s24, 1
      %p47 = por %p45, %p46
      %p49 = scmp.ne.s32.totalorder %s32, %s48
      %p50 = scmp.eq.s32.totalorder %s24, 0
      %p51 = por %p49, %p50
      %s53 = sadd.s32 %s52, 1
      %p56 = scmp.eq.s32.totalorder %s18, 1
      %p57 = scmp.ne.s32.totalorder %s52, %s54
      %p58 = scmp.eq.s32.totalorder %s18, 0
      %p59 = por %p57, %p58
      %p60 = scmp.ne.s32.totalorder %s52, %s54
      %p61 = scmp.eq.s32.totalorder %s23, 1
      %p62 = por %p60, %p61
      %p63 = scmp.ne.s32.totalorder %s54, %s55
      %p64 = scmp.eq.s32.totalorder %s23, 0
      %p65 = por %p63, %p64
      %p66 = scmp.ne.s32.totalorder %s54, %s55
      %p67 = scmp.eq.s32.totalorder %s24, 1
      %p68 = por %p66, %p67
      %p70 = scmp.ne.s32.totalorder %s55, %s69
      %p71 = scmp.eq.s32.totalorder %s24, 0
      %p72 = por %p70, %p71
      %s74 = sadd.s32 %s73, 1
      %p77 = scmp.eq.s32.totalorder %s18, 1
      %p78 = scmp.ne.s32.totalorder %s73, %s75
      %p79 = scmp.eq.s32.totalorder %s18, 0
      %p80 = por %p78, %p79
      %p81 = scmp.ne.s32.totalorder %s73, %s75
      %p82 = scmp.eq.s32.totalorder %s23, 1
      %p83 = por %p81, %p82
      %p84 = scmp.ne.s32.totalorder %s75, %s76
      %p85 = scmp.eq.s32.totalorder %s23, 0
      %p86 = por %p84, %p85
      %p87 = scmp.ne.s32.totalorder %s75, %s76
      %p88 = scmp.eq.s32.totalorder %s24, 1
      %p89 = por %p87, %p88
      %p91 = scmp.ne.s32.totalorder %s76, %s90
      %p92 = scmp.eq.s32.totalorder %s24, 0
      %p93 = por %p91, %p92
      %s95 = sadd.s32 %s94, 1
      %p98 = scmp.eq.s32.totalorder %s18, 1
      %p99 = scmp.ne.s32.totalorder %s94, %s96
      %p100 = scmp.eq.s32.totalorder %s18, 0
      %p101 = por %p99, %p100
      %p102 = scmp.ne.s32.totalorder %s94, %s96
      %p103 = scmp.eq.s32.totalorder %s23, 1
      %p104 = por %p102, %p103
      %p105 = scmp.ne.s32.totalorder %s96, %s97
      %p106 = scmp.eq.s32.totalorder %s23, 0
      %p107 = por %p105, %p106
      %p108 = scmp.ne.s32.totalorder %s96, %s97
      %p109 = scmp.eq.s32.totalorder %s24, 1
      %p110 = por %p108, %p109
      %p112 = scmp.ne.s32.totalorder %s97, %s111
      %p113 = scmp.eq.s32.totalorder %s24, 0
      %p114 = por %p112, %p113
      %s116 = sadd.s32 %s115, 1
      %p119 = scmp.eq.s32.totalorder %s18, 1
      %p120 = scmp.ne.s32.totalorder %s115, %s117
      %p121 = scmp.eq.s32.totalorder %s18, 0
      %p122 = por %p120, %p121
      %p123 = scmp.ne.s32.totalorder %s115, %s117
      %p124 = scmp.eq.s32.totalorder %s23, 1
      %p125 = por %p123, %p124
      %p126 = scmp.ne.s32.totalorder %s117, %s118
      %p127 = scmp.eq.s32.totalorder %s23, 0
      %p128 = por %p126, %p127
      %p129 = scmp.ne.s32.totalorder %s117, %s118
      %p130 = scmp.eq.s32.totalorder %s24, 1
      %p131 = por %p129, %p130
      %p133 = scmp.ne.s32.totalorder %s118, %s132
      %p134 = scmp.eq.s32.totalorder %s24, 0
      %p135 = por %p133, %p134
      %s137 = sadd.s32 %s136, 1
      %p140 = scmp.eq.s32.totalorder %s18, 1
      %p141 = scmp.ne.s32.totalorder %s136, %s138
      %p142 = scmp.eq.s32.totalorder %s18, 0
      %p143 = por %p141, %p142
      %p144 = scmp.ne.s32.totalorder %s136, %s138
      %p145 = scmp.eq.s32.totalorder %s23, 1
      %p146 = por %p144, %p145
      %p147 = scmp.ne.s32.totalorder %s138, %s139
      %p148 = scmp.eq.s32.totalorder %s23, 0
      %p149 = por %p147, %p148
      %p150 = scmp.ne.s32.totalorder %s138, %s139
      %p151 = scmp.eq.s32.totalorder %s24, 1
      %p152 = por %p150, %p151
      %p154 = scmp.ne.s32.totalorder %s139, %s153
      %p155 = scmp.eq.s32.totalorder %s24, 0
      %p156 = por %p154, %p155
      %s158 = sadd.s32 %s157, 1
      %p161 = scmp.eq.s32.totalorder %s18, 1
      %p162 = scmp.ne.s32.totalorder %s157, %s159
      %p163 = scmp.eq.s32.totalorder %s18, 0
      %p164 = por %p162, %p163
      %p165 = scmp.ne.s32.totalorder %s157, %s159
      %p166 = scmp.eq.s32.totalorder %s23, 1
      %p167 = por %p165, %p166
      %p168 = scmp.ne.s32.totalorder %s159, %s160
      %p169 = scmp.eq.s32.totalorder %s23, 0
      %p170 = por %p168, %p169
      %p171 = scmp.ne.s32.totalorder %s159, %s160
      %p172 = scmp.eq.s32.totalorder %s24, 1
      %p173 = por %p171, %p172
      %p175 = scmp.ne.s32.totalorder %s160, %s174
      %p176 = scmp.eq.s32.totalorder %s24, 0
      %p177 = por %p175, %p176
      %s178 = ssub.s32 %s18, %s25
      %p179 = scmp.eq.s32.totalorder %s178, 0
      %s181 = sadd.s32 %s180, 1
      %s182 = scalar_select %p179, %s180, %s181
      %p185 = pneg %p179
      %p186 = scmp.eq.s32.totalorder %s18, 1
      %p187 = por %p185, %p186
      %p188 = scmp.ne.s32.totalorder %s180, %s183
      %p189 = scmp.eq.s32.totalorder %s18, 0
      %p190 = por %p188, %p189
      %p191 = scmp.ne.s32.totalorder %s180, %s183
      %p192 = scmp.eq.s32.totalorder %s23, 1
      %p193 = por %p191, %p192
      %p194 = scmp.ne.s32.totalorder %s183, %s184
      %p195 = scmp.eq.s32.totalorder %s23, 0
      %p196 = por %p194, %p195
      %p197 = scmp.ne.s32.totalorder %s183, %s184
      %p198 = scmp.eq.s32.totalorder %s24, 1
      %p199 = por %p197, %p198
      %p201 = scmp.ne.s32.totalorder %s184, %s200
      %p202 = scmp.eq.s32.totalorder %s24, 0
      %p203 = por %p201, %p202
      %p204 = scmp.le.s32.totalorder 1, %s18
      %p205 = scmp.lt.s32.totalorder %s18, 3
      %p206 = pnand %p204, %p205
      %p207 = pneg %p206
      // Predicated region
      $region9: #{sc_dnn_forward.1} parent=5 // pred_check
        _
      $region10: #{sc_dnn_forward.1} parent=5 // pred_check_branch
        %209 = sbr.rel (%p206) target = $region12
      $region11: #{sc_dnn_forward.1} parent=5 // pred_region
        %s210 = ssub.s32 %s18, 1
        // Predicated region
        $region13: #{sc_dnn_forward.1} parent=11 // pred_check
          %p211 = pneg %p65
        $region14: #{sc_dnn_forward.1} parent=11 // pred_check_branch
          %213 = sbr.rel (%p211) target = $region16
        $region15: #{sc_dnn_forward.1} parent=11 // pred_region
          _
        $region16: #{sc_dnn_forward.1} parent=11 // pred_fallthru
          _
        // Predicated region
        $region17: #{sc_dnn_forward.1} parent=11 // pred_check
          %p214 = pneg %p86
        $region18: #{sc_dnn_forward.1} parent=11 // pred_check_branch
          %216 = sbr.rel (%p214) target = $region20
        $region19: #{sc_dnn_forward.1} parent=11 // pred_region
          _
        $region20: #{sc_dnn_forward.1} parent=11 // pred_fallthru
          _
        // Predicated region
        $region21: #{sc_dnn_forward.1} parent=11 // pred_check
          %p217 = pneg %p107
        $region22: #{sc_dnn_forward.1} parent=11 // pred_check_branch
          %219 = sbr.rel (%p217) target = $region24
        $region23: #{sc_dnn_forward.1} parent=11 // pred_region
          _
        $region24: #{sc_dnn_forward.1} parent=11 // pred_fallthru
          _
        // Predicated region
        $region25: #{sc_dnn_forward.1} parent=11 // pred_check
          %p220 = pneg %p128
        $region26: #{sc_dnn_forward.1} parent=11 // pred_check_branch
          %222 = sbr.rel (%p220) target = $region28
        $region27: #{sc_dnn_forward.1} parent=11 // pred_region
          _
        $region28: #{sc_dnn_forward.1} parent=11 // pred_fallthru
          _
        // Predicated region
        $region29: #{sc_dnn_forward.1} parent=11 // pred_check
          %p223 = pneg %p149
        $region30: #{sc_dnn_forward.1} parent=11 // pred_check_branch
          %225 = sbr.rel (%p223) target = $region32
        $region31: #{sc_dnn_forward.1} parent=11 // pred_region
          _
        $region32: #{sc_dnn_forward.1} parent=11 // pred_fallthru
          _
        // Predicated region
        $region33: #{sc_dnn_forward.1} parent=11 // pred_check
          %p226 = pneg %p170
        $region34: #{sc_dnn_forward.1} parent=11 // pred_check_branch
          %228 = sbr.rel (%p226) target = $region36
        $region35: #{sc_dnn_forward.1} parent=11 // pred_region
          _
        $region36: #{sc_dnn_forward.1} parent=11 // pred_fallthru
          _
      $region12: #{sc_dnn_forward.1} parent=5 // pred_fallthru
        _
      %p229 = scmp.lt.s32.totalorder %s18, 2
      // Predicated region
      $region37: #{sc_dnn_forward.1} parent=5 // pred_check
        %p230 = pneg %p229
      $region38: #{sc_dnn_forward.1} parent=5 // pred_check_branch
        %232 = sbr.rel (%p230) target = $region40
      $region39: #{sc_dnn_forward.1} parent=5 // pred_region
        // Predicated region
        $region41: #{sc_dnn_forward.1} parent=39 // pred_check
          %p233 = pneg %p38
        $region42: #{sc_dnn_forward.1} parent=39 // pred_check_branch
          %235 = sbr.rel (%p233) target = $region44
        $region43: #{sc_dnn_forward.1} parent=39 // pred_region
          %s236 = smul.u32 16, %s18
          %p237 = scmp.lt.s32.totalorder %s236, 31
          %s238 = scalar_select %p237, %s236, 31
          %s239 = smul.addr %s238, 4
          %s240 = scalar_lea.vmem %s0, %s239
          %s241 = smul.u32 16, %s18
        $region44: #{sc_dnn_forward.1} parent=39 // pred_fallthru
          _
      $region40: #{sc_dnn_forward.1} parent=5 // pred_fallthru
        _
      %p242 = scmp.le.s32.totalorder 1, %s18
      %p243 = scmp.lt.s32.totalorder %s18, 3
      %p244 = pnand %p242, %p243
      %p245 = pneg %p244
      // Predicated region
      $region45: #{sc_dnn_forward.1} parent=5 // pred_check
        _
      $region46: #{sc_dnn_forward.1} parent=5 // pred_check_branch
        %247 = sbr.rel (%p244) target = $region48
      $region47: #{sc_dnn_forward.1} parent=5 // pred_region
        %s248 = ssub.s32 %s18, 1
        %s249 = smul.u32 16, %s23
        %p250 = scmp.lt.s32.totalorder %s249, 31
        %s251 = scalar_select %p250, %s249, 31
        %s252 = smul.addr %s251, 4
        %s253 = scalar_lea.vmem %s0, %s252
        %p254 = pneg %p44
        %p255 = pneg %p41
        %p256 = pneg %p65
        %p257 = pneg %p62
        %p258 = pneg %p86
        %p259 = pneg %p83
        %p260 = pneg %p107
        %p261 = pneg %p104
        %p262 = pneg %p128
        %p263 = pneg %p125
        %p264 = pneg %p149
        %p265 = pneg %p146
        %p266 = pneg %p170
        %p267 = pneg %p167
        %p268 = pneg %p196
        %p269 = pneg %p193
        %s270 = sand.u32 %s183, 1
        %s271 = scalar_lea.sflag [#allocation4], %s270
        %s272 = sand.u32 %s183, 1
        %s273 = scalar_lea.vmem [#allocation3], %s272
        %s274 = smul.u32 16, %s23
        %p275 = scmp.lt.s32.totalorder %s274, 31
        %s276 = scalar_select %p275, %s274, 31
        %s277 = smul.addr %s276, 4
        %s278 = scalar_lea.vmem %s0, %s277
        %s279 = smul.u32 16, %s23
        %v281 = vld [vmem:[%s278] sm:$0xf]
        %v282 = vld [vmem:[%s278 + $0x4] sm:$0xf]
        %v283 = vld [vmem:[%s278 + $0x8] sm:$0xf]
        %v284 = vld [vmem:[%s278 + $0xc] sm:$0xf]
        %v285 = vld [vmem:[%s278 + $0x10] sm:$0xf]
        %v286 = vld [vmem:[%s278 + $0x14] sm:$0xf]
        %v287 = vld [vmem:[%s278 + $0x18] sm:$0xf]
        %v288 = vld [vmem:[%s278 + $0x1c] sm:$0xf]
        %v289 = vld [vmem:[%s278 + $0x20] sm:$0xf]
        %v290 = vld [vmem:[%s278 + $0x24] sm:$0xf]
        %v291 = vld [vmem:[%s278 + $0x28] sm:$0xf]
        %v292 = vld [vmem:[%s278 + $0x2c] sm:$0xf]
        %v293 = vld [vmem:[%s278 + $0x30] sm:$0xf]
        %v294 = vld [vmem:[%s278 + $0x34] sm:$0xf]
        %v295 = vld [vmem:[%s278 + $0x38] sm:$0xf]
        %v296 = vld [vmem:[%s278 + $0x3c] sm:$0xf]
        %v297 = vld [vmem:[%s1] sm:$0xf]
        %v298 = vld [vmem:[%s1 + $0x4] sm:$0xf]
        %v299 = vld [vmem:[%s1 + $0x8] sm:$0xf]
        %v300 = vld [vmem:[%s1 + $0xc] sm:$0xf]
        %v301 = vld [vmem:[%s2] sm:$0x1]
        %v303 = vperm.slane %v301, 0
        %v321 = vunpack.c.l.b16 %v281
        %v322 = vunpack.c.l.b16 %v282
        %v323 = vunpack.c.l.b16 %v283
        %v324 = vunpack.c.l.b16 %v284
        %v325 = vunpack.c.l.b16 %v285
        %v326 = vunpack.c.l.b16 %v286
        %v327 = vunpack.c.l.b16 %v287
        %v328 = vunpack.c.l.b16 %v288
        %v329 = vunpack.c.l.b16 %v289
        %v330 = vunpack.c.l.b16 %v290
        %v331 = vunpack.c.l.b16 %v291
        %v332 = vunpack.c.l.b16 %v292
        %v333 = vunpack.c.l.b16 %v293
        %v334 = vunpack.c.l.b16 %v294
        %v335 = vunpack.c.l.b16 %v295
        %v336 = vunpack.c.l.b16 %v296
        %v337 = vpack.c.b16 %v322, %v321
        %v338 = vpack.c.b16 %v324, %v323
        %v339 = vpack.c.b16 %v326, %v325
        %v340 = vpack.c.b16 %v328, %v327
        %v341 = vpack.c.b16 %v330, %v329
        %v342 = vpack.c.b16 %v332, %v331
        %v343 = vpack.c.b16 %v334, %v333
        %v344 = vpack.c.b16 %v336, %v335
        %v349 = vunpack.c.l.b16 %v297
        %v350 = vunpack.c.l.b16 %v298
        %v351 = vunpack.c.l.b16 %v299
        %v352 = vunpack.c.l.b16 %v300
        %v353 = vpack.c.b16 %v350, %v349
        %v354 = vpack.c.b16 %v352, %v351
        %vm357 = vcmask 261120
        %v359 = vsel %vm357, %v337, 0
        %v362 = vsel %vm357, %v338, 0
        %v365 = vsel %vm357, %v339, 0
        %v368 = vsel %vm357, %v340, 0
        %v371 = vsel %vm357, %v341, 0
        %v374 = vsel %vm357, %v342, 0
        %v377 = vsel %vm357, %v343, 0
        %v380 = vsel %vm357, %v344, 0
        %382 = vmatpush.bf16.msra.mxu0 0
        %383 = vmatpush.bf16.msra.mxu0 0
        %384 = vmatpush.bf16.msra.mxu0 0
        %385 = vmatpush.bf16.msra.mxu0 0
        %386 = vmatpush.bf16.msra.mxu0 0
        %387 = vmatpush.bf16.msra.mxu0 0
        %388 = vmatpush.bf16.msra.mxu0 %v354
        %389 = vmatpush.bf16.msra.mxu0 %v353
        %390 = vmatmul.bf16.gmra.mxu0 %v359
        %v391 = vpop.f32.mrf.mxu0
        %v392 = vadd.f32 %v303, %v391
        %v393 = vpop.f32.mrf.mxu0
        %v394 = vadd.f32 %v303, %v393
        %395 = vmatmul.bf16.gmra.mxu0 %v362
        %v396 = vpop.f32.mrf.mxu0
        %v397 = vadd.f32 %v303, %v396
        %v398 = vpop.f32.mrf.mxu0
        %v399 = vadd.f32 %v303, %v398
        %400 = vmatmul.bf16.gmra.mxu0 %v365
        %v401 = vpop.f32.mrf.mxu0
        %v402 = vadd.f32 %v303, %v401
        %v403 = vpop.f32.mrf.mxu0
        %v404 = vadd.f32 %v303, %v403
        %405 = vmatmul.bf16.gmra.mxu0 %v368
        %v406 = vpop.f32.mrf.mxu0
        %v407 = vadd.f32 %v303, %v406
        %v408 = vpop.f32.mrf.mxu0
        %v409 = vadd.f32 %v303, %v408
        %410 = vmatmul.bf16.gmra.mxu0 %v371
        %v411 = vpop.f32.mrf.mxu0
        %v412 = vadd.f32 %v303, %v411
        %v413 = vpop.f32.mrf.mxu0
        %v414 = vadd.f32 %v303, %v413
        %415 = vmatmul.bf16.gmra.mxu0 %v374
        %v416 = vpop.f32.mrf.mxu0
        %v417 = vadd.f32 %v303, %v416
        %v418 = vpop.f32.mrf.mxu0
        %v419 = vadd.f32 %v303, %v418
        %420 = vmatmul.bf16.gmra.mxu0 %v377
        %v421 = vpop.f32.mrf.mxu0
        %v422 = vadd.f32 %v303, %v421
        %v423 = vpop.f32.mrf.mxu0
        %v424 = vadd.f32 %v303, %v423
        %425 = vmatmul.bf16.gmra.mxu0 %v380
        %v426 = vpop.f32.mrf.mxu0
        %v427 = vadd.f32 %v303, %v426
        %v428 = vpop.f32.mrf.mxu0
        %v429 = vadd.f32 %v303, %v428
        %430 = vdwg.mxu0
        %v431 = vmax.f32 %v392, 0.0
        %v432 = vmax.f32 %v394, 0.0
        %v433 = vmax.f32 %v397, 0.0
        %v434 = vmax.f32 %v399, 0.0
        %v435 = vmax.f32 %v402, 0.0
        %v436 = vmax.f32 %v404, 0.0
        %v437 = vmax.f32 %v407, 0.0
        %v438 = vmax.f32 %v409, 0.0
        %v439 = vmax.f32 %v412, 0.0
        %v440 = vmax.f32 %v414, 0.0
        %v441 = vmax.f32 %v417, 0.0
        %v442 = vmax.f32 %v419, 0.0
        %v443 = vmax.f32 %v422, 0.0
        %v444 = vmax.f32 %v424, 0.0
        %v445 = vmax.f32 %v427, 0.0
        %v446 = vmax.f32 %v429, 0.0
        %v447 = vpack.c.bf16 %v432, %v431
        %v448 = vpack.c.bf16 %v434, %v433
        %v449 = vpack.c.bf16 %v436, %v435
        %v450 = vpack.c.bf16 %v438, %v437
        %v451 = vpack.c.bf16 %v440, %v439
        %v452 = vpack.c.bf16 %v442, %v441
        %v453 = vpack.c.bf16 %v444, %v443
        %v454 = vpack.c.bf16 %v446, %v445
        %v455 = vld [vmem:[%s3] sm:$0xf]
        %v456 = vld [vmem:[%s3 + $0x4] sm:$0xf]
        %v457 = vld [vmem:[%s3 + $0x8] sm:$0xf]
        %v458 = vld [vmem:[%s3 + $0xc] sm:$0xf]
        %v459 = vld [vmem:[%s3 + $0x10] sm:$0xf]
        %v460 = vld [vmem:[%s3 + $0x14] sm:$0xf]
        %v461 = vld [vmem:[%s3 + $0x18] sm:$0xf]
        %v462 = vld [vmem:[%s3 + $0x1c] sm:$0xf]
        %v463 = vld [vmem:[%s4] sm:$0x1]
        %v465 = vperm.slane %v463, 0
        %v475 = vunpack.c.l.b16 %v455
        %v476 = vunpack.c.l.b16 %v456
        %v477 = vunpack.c.l.b16 %v457
        %v478 = vunpack.c.l.b16 %v458
        %v479 = vunpack.c.l.b16 %v459
        %v480 = vunpack.c.l.b16 %v460
        %v481 = vunpack.c.l.b16 %v461
        %v482 = vunpack.c.l.b16 %v462
        %v483 = vpack.c.b16 %v476, %v475
        %v484 = vpack.c.b16 %v478, %v477
        %v485 = vpack.c.b16 %v480, %v479
        %v486 = vpack.c.b16 %v482, %v481
        %vm491 = vcmask 523264
        %v493 = vsel %vm491, %v447, 0
        %v496 = vsel %vm491, %v448, 0
        %v499 = vsel %vm491, %v449, 0
        %v502 = vsel %vm491, %v450, 0
        %v505 = vsel %vm491, %v451, 0
        %v508 = vsel %vm491, %v452, 0
        %v511 = vsel %vm491, %v453, 0
        %v514 = vsel %vm491, %v454, 0
        %516 = vmatpush.bf16.msra.mxu0 0
        %517 = vmatpush.bf16.msra.mxu0 0
        %518 = vmatpush.bf16.msra.mxu0 0
        %519 = vmatpush.bf16.msra.mxu0 0
        %520 = vmatpush.bf16.msra.mxu0 %v486
        %521 = vmatpush.bf16.msra.mxu0 %v485
        %522 = vmatpush.bf16.msra.mxu0 %v484
        %523 = vmatpush.bf16.msra.mxu0 %v483
        %524 = vmatmul.bf16.gmra.mxu0 %v493
        %v525 = vpop.f32.mrf.mxu0
        %v526 = vadd.f32 %v465, %v525
        %v527 = vpop.f32.mrf.mxu0
        %v528 = vadd.f32 %v465, %v527
        %529 = vmatmul.bf16.gmra.mxu0 %v496
        %v530 = vpop.f32.mrf.mxu0
        %v531 = vadd.f32 %v465, %v530
        %v532 = vpop.f32.mrf.mxu0
        %v533 = vadd.f32 %v465, %v532
        %534 = vmatmul.bf16.gmra.mxu0 %v499
        %v535 = vpop.f32.mrf.mxu0
        %v536 = vadd.f32 %v465, %v535
        %v537 = vpop.f32.mrf.mxu0
        %v538 = vadd.f32 %v465, %v537
        %539 = vmatmul.bf16.gmra.mxu0 %v502
        %v540 = vpop.f32.mrf.mxu0
        %v541 = vadd.f32 %v465, %v540
        %v542 = vpop.f32.mrf.mxu0
        %v543 = vadd.f32 %v465, %v542
        %544 = vmatmul.bf16.gmra.mxu0 %v505
        %v545 = vpop.f32.mrf.mxu0
        %v546 = vadd.f32 %v465, %v545
        %v547 = vpop.f32.mrf.mxu0
        %v548 = vadd.f32 %v465, %v547
        %549 = vmatmul.bf16.gmra.mxu0 %v508
        %v550 = vpop.f32.mrf.mxu0
        %v551 = vadd.f32 %v465, %v550
        %v552 = vpop.f32.mrf.mxu0
        %v553 = vadd.f32 %v465, %v552
        %554 = vmatmul.bf16.gmra.mxu0 %v511
        %v555 = vpop.f32.mrf.mxu0
        %v556 = vadd.f32 %v465, %v555
        %v557 = vpop.f32.mrf.mxu0
        %v558 = vadd.f32 %v465, %v557
        %559 = vmatmul.bf16.gmra.mxu0 %v514
        %v560 = vpop.f32.mrf.mxu0
        %v561 = vadd.f32 %v465, %v560
        %v562 = vpop.f32.mrf.mxu0
        %v563 = vadd.f32 %v465, %v562
        %564 = vdwg.mxu0
        %v565 = vmax.f32 %v526, 0.0
        %v566 = vmax.f32 %v528, 0.0
        %v567 = vmax.f32 %v531, 0.0
        %v568 = vmax.f32 %v533, 0.0
        %v569 = vmax.f32 %v536, 0.0
        %v570 = vmax.f32 %v538, 0.0
        %v571 = vmax.f32 %v541, 0.0
        %v572 = vmax.f32 %v543, 0.0
        %v573 = vmax.f32 %v546, 0.0
        %v574 = vmax.f32 %v548, 0.0
        %v575 = vmax.f32 %v551, 0.0
        %v576 = vmax.f32 %v553, 0.0
        %v577 = vmax.f32 %v556, 0.0
        %v578 = vmax.f32 %v558, 0.0
        %v579 = vmax.f32 %v561, 0.0
        %v580 = vmax.f32 %v563, 0.0
        %v581 = vld [vmem:[%s5] sm:$0x1]
        %v582 = vld [vmem:[#allocation2] sm:$0x1]
        %584 = vset.pattern.permute.xlu0 0
        %585 = vperm.xlu0 %584, %v582
        %v586 = vpop.permute.xlu0 %585
        %v588 = vperm.slane %v586, 0
        %v590 = vsel %vm357, %v581, 0
        %v593 = vsel %vm357, %v565, 0
        %v596 = vsel %vm357, %v566, 0
        %v599 = vsel %vm357, %v567, 0
        %v602 = vsel %vm357, %v568, 0
        %v605 = vsel %vm357, %v569, 0
        %v608 = vsel %vm357, %v570, 0
        %v611 = vsel %vm357, %v571, 0
        %v614 = vsel %vm357, %v572, 0
        %v617 = vsel %vm357, %v573, 0
        %v620 = vsel %vm357, %v574, 0
        %v623 = vsel %vm357, %v575, 0
        %v626 = vsel %vm357, %v576, 0
        %v629 = vsel %vm357, %v577, 0
        %v632 = vsel %vm357, %v578, 0
        %v635 = vsel %vm357, %v579, 0
        %v638 = vsel %vm357, %v580, 0
        %640 = vmatpush.xpose.msra.mxu0 %v638
        %641 = vmatpush.xpose.msra.mxu0 %v635
        %642 = vmatpush.xpose.msra.mxu0 %v632
        %643 = vmatpush.xpose.msra.mxu0 %v629
        %644 = vmatpush.xpose.msra.mxu0 %v626
        %645 = vmatpush.xpose.msra.mxu0 %v623
        %646 = vmatpush.xpose.msra.mxu0 %v620
        %647 = vmatpush.xpose.msra.mxu0 %v617
        %648 = vmatpush.xpose.msra.mxu0 %v614
        %649 = vmatpush.xpose.msra.mxu0 %v611
        %650 = vmatpush.xpose.msra.mxu0 %v608
        %651 = vmatpush.xpose.msra.mxu0 %v605
        %652 = vmatpush.xpose.msra.mxu0 %v602
        %653 = vmatpush.xpose.msra.mxu0 %v599
        %654 = vmatpush.xpose.msra.mxu0 %v596
        %655 = vmatpush.xpose.msra.mxu0 %v593
        %656 = vmatmul.f32.gmra.mxu0 %v590
        %v657 = vpop.f32.mrf.mxu0
        %v658 = vadd.f32 %v588, %v657
        %659 = vdwg.mxu0
        %660 = vst [vmem:[%s273] sm:$0x1] %v658
        %s661 = sand.u32 %s183, 1
        %s662 = scalar_lea.sflag [#allocation4], %s661
        %s663 = sand.u32 %s183, 1
        %s664 = scalar_lea.vmem [#allocation3], %s663
        // Predicated region
        $region49: #{sc_dnn_forward.1} parent=47 // pred_check
          %p665 = pneg %p193
        $region50: #{sc_dnn_forward.1} parent=47 // pred_check_branch
          %667 = sbr.rel (%p665) target = $region52
        $region51: #{sc_dnn_forward.1} parent=47 // pred_region
          %669 = vsyncadd %s662, 0
          %s670 = scalar_lea.hbm %s7, %s23
          %s672 = sshll.u32 %s664, 4
          %s673 = int_to_ptr.vmem [resolvable:$true] %s672
          %s674 = sshll.u32 %s670, 4
          %s675 = int_to_ptr.hbm [resolvable:$true] %s674
          %677 = dma.vmem_to_hbm [thread:$0]  %s673, 16, %s675, %s662
        $region52: #{sc_dnn_forward.1} parent=47 // pred_fallthru
          _
      $region48: #{sc_dnn_forward.1} parent=5 // pred_fallthru
        _
      %p678 = scmp.le.s32.totalorder 2, %s18
      // Predicated region
      $region53: #{sc_dnn_forward.1} parent=5 // pred_check
        %p679 = pneg %p678
      $region54: #{sc_dnn_forward.1} parent=5 // pred_check_branch
        %681 = sbr.rel (%p679) target = $region56
      $region55: #{sc_dnn_forward.1} parent=5 // pred_region
        %s682 = ssub.s32 %s18, 2
        // Predicated region
        $region57: #{sc_dnn_forward.1} parent=55 // pred_check
          %p683 = pneg %p199
        $region58: #{sc_dnn_forward.1} parent=55 // pred_check_branch
          %685 = sbr.rel (%p683) target = $region60
        $region59: #{sc_dnn_forward.1} parent=55 // pred_region
          %s686 = sand.u32 %s184, 1
          %s687 = scalar_lea.sflag [#allocation4], %s686
          %s688 = sand.u32 %s184, 1
          %s689 = scalar_lea.vmem [#allocation3], %s688
          %691 = dma.done %s687, 16
        $region60: #{sc_dnn_forward.1} parent=55 // pred_fallthru
          _
      $region56: #{sc_dnn_forward.1} parent=5 // pred_fallthru
        _
    $region6: #{sc_dnn_forward.1} parent=1 // loop_footer
      %s22 = sadd.s32 1, %s18
    $region7: #{sc_dnn_forward.1} parent=1 // loop_footer_branch
      %17 = sbr.rel target = $region3
    $region8: #{sc_dnn_forward.1} parent=1 // loop_exit
      _
    %692 = vsyncpa [#allocation4], 1
    %s693 = scalar_lea.sflag [#allocation4], 1
    %694 = vsyncpa %s693, 1

</llo_original>
